<compile_context>
chip_gen: v5e
topology: v5e:2x2
jax: 0.10.0
libtpu: 0.0.40
codegen_flags: <defaults>
</compile_context>

<pallas_src>
import math

import jax
import jax.numpy as jnp
from jax.experimental import pallas as pl
from jax.experimental.pallas import tpu as pltpu


# ---------------------------------------------------------------------------
# VMEM budgeting (generation-aware)
# ---------------------------------------------------------------------------

def _vmem_budgets():
    """Returns (tile_budget_bytes, vmem_limit_bytes), generation-aware.

    v5e/v6e have 128 MiB VMEM per core, v7x has 64 MiB; querying the actual
    capacity lets v5e/v6e use much larger batch tiles (better per-grid-step
    amortization) while staying safe on v7x.
    """
    cap = 64 * 1024 * 1024                      # conservative fallback (v7x)
    try:
        info = pltpu.get_tpu_info()
        cap = int(getattr(info, "vmem_capacity_bytes", cap))
    except Exception:                           # no TPU / older API: keep fallback
        pass
    limit = max(16 * 1024 * 1024, min(int(cap * 0.8), cap - (8 << 20)))
    # Half the scoped limit for the pipelined tiles; the rest is headroom for
    # Mosaic internal scratch / kernel temporaries / vreg spills.
    return limit // 2, limit


def _sublane_multiple(dtype):
    # f32 -> 8, bf16/f16 -> 16, int8/fp8 -> 32 rows per packed sublane tile.
    return {4: 8, 2: 16, 1: 32}.get(jnp.dtype(dtype).itemsize, 8)


def _pick_group_tile(G, K, O, w_itemsize, budget):
    """Largest divisor GT of G whose (conservatively double-buffered) weight
    tile leaves at least half the tile budget to the batch tiles.

    Partial group tiles must be lane-legal: the x/out blocks are (tb, GT*K)
    and (tb, GT*O), so GT < G requires GT*K and GT*O to be multiples of 128.
    """
    divisors = sorted((d for d in range(1, G + 1) if G % d == 0), reverse=True)
    fallback = G
    for gt in divisors:
        lane_ok = (gt == G) or ((gt * K) % 128 == 0 and (gt * O) % 128 == 0)
        if not lane_ok:
            continue
        fallback = gt
        if 2 * gt * K * O * w_itemsize <= budget // 2:
            return gt
    # TODO(synk): tile the contraction (K) / output (O) dims when even the
    # smallest lane-legal group tile's weight exceeds half the VMEM budget.
    return fallback


def _pick_batch_tile(B, per_row_bytes, fixed_bytes, budget, tb_max, row_mult):
    """Largest batch tile (multiple of the sublane packing) that fits."""
    avail = max(budget - fixed_bytes, row_mult * per_row_bytes)
    tb = int(avail // per_row_bytes)
    tb = max(1, min(tb, tb_max, B))
    if tb >= B:
        return B                                 # single full-extent block
    return max(row_mult, (tb // row_mult) * row_mult)


# ---------------------------------------------------------------------------
# Kernel
# ---------------------------------------------------------------------------

def _make_kernel(GT, K, O, has_bias, num_group_tiles, cast_dtype):
    """Per-group MXU dots on a (TB, GT*K) x tile against a resident (GT, K, O)
    weight tile; the (TB, GT*O) output slab is assembled in-register and
    stored lane-dense in one shot.  No block-diagonal weight is ever
    materialized (neither in HBM nor in VMEM) and no FLOPs are wasted on zero
    blocks."""
    # TODO(synk): on v6e/v7x, fuse 2 groups per dot (256-wide contraction /
    # output) when the layer is compute-limited; memory-bound sizes don't care.

    def kernel(*refs):
        if has_bias:
            x_ref, w_ref, b_ref, o_ref = refs
        else:
            x_ref, w_ref, o_ref = refs

        xt = x_ref[...]
        if cast_dtype is not None:
            # In-VMEM cast: x is read from HBM exactly once, in its own dtype.
            xt = xt.astype(cast_dtype)

        # Absolute index of the first group handled by this grid step.
        g0 = 0 if num_group_tiles == 1 else pl.program_id(0) * GT

        parts = []
        for g in range(GT):                      # static unroll over the tile
            acc = jnp.dot(xt[:, g * K:(g + 1) * K], w_ref[g],
                          preferred_element_type=jnp.float32)
            if has_bias:
                acc = acc + b_ref[pl.ds(g0 + g, 1), :]   # (1, O) f32 row
            parts.append(acc)

        out = parts[0] if GT == 1 else jnp.concatenate(parts, axis=-1)
        o_ref[...] = out.astype(o_ref.dtype)

    return kernel


def _grouped_linear_2d(x2d, weight_c, bias_f32, out_dtype, GT, tb, vmem_limit):
    B, _ = x2d.shape
    G, K, O = weight_c.shape
    num_gt = G // GT
    has_bias = bias_f32 is not None
    cast_dtype = weight_c.dtype if weight_c.dtype != x2d.dtype else None

    # Batch axis innermost: the (GT, K, O) weight tile's block index is
    # invariant across it, so it is DMA'd once per group tile and then stays
    # resident (re-fetches are skipped).
    # TODO(synk): mark the weight/bias specs pipeline_mode=pl.Buffered(1) once
    # single-buffered pipeline_mode is confirmed supported; the wrapper's VMEM
    # accounting conservatively assumes two buffers today.
    grid = (num_gt, pl.cdiv(B, tb))

    in_specs = [
        pl.BlockSpec((tb, GT * K), lambda gt, b: (b, gt)),
        pl.BlockSpec((GT, K, O), lambda gt, b: (gt, 0, 0)),
    ]
    args = [x2d, weight_c]
    if has_bias:
        in_specs.append(pl.BlockSpec((G, O), lambda gt, b: (0, 0)))  # resident
        args.append(bias_f32)

    return pl.pallas_call(
        _make_kernel(GT, K, O, has_bias, num_gt, cast_dtype),
        out_shape=jax.ShapeDtypeStruct((B, G * O), out_dtype),
        grid_spec=pltpu.PrefetchScalarGridSpec(
            num_scalar_prefetch=0,
            grid=grid,
            in_specs=in_specs,
            out_specs=pl.BlockSpec((tb, GT * O), lambda gt, b: (b, gt)),
        ),
        compiler_params=pltpu.CompilerParams(
            dimension_semantics=("parallel", "parallel"),
            vmem_limit_bytes=int(vmem_limit),
        ),
    )(*args)


# ---------------------------------------------------------------------------
# Public wrapper (matches GroupedLinear.forward semantics)
# ---------------------------------------------------------------------------

def grouped_linear(x, weight, bias=None, *, reshape=True, compute_dtype=None,
                   group_tile=None, block_b_max=1024):
    """Pallas equivalent of GroupedLinear.forward.

    weight: (G, K, O)  (stacked Linear.weight.T, as in the torch module)
    bias:   (G, O) or None (added in f32 to the f32 accumulator)
    x:      (..., G*K) if reshape else (..., G, K)
    compute_dtype: optional matmul operand dtype (e.g. jnp.bfloat16).  Only the
      small, reusable weight is cast in the wrapper; x is cast tile-by-tile
      inside the kernel (no extra HBM pass).  Accumulation is always f32 and
      the output keeps x.dtype (bf16 compute changes numerics vs. f32 torch).
    group_tile: optional override of the number of groups per grid step
      (must divide G; if < G, group_tile*K and group_tile*O must be
      multiples of 128).
    """
    G, K, O = weight.shape
    out_dtype = x.dtype

    if reshape:
        *base_shape, dim = x.shape
        assert dim == G * K, f"last dim {dim} != n_groups*input_size {G * K}"
    else:
        assert x.ndim >= 2 and x.shape[-2] == G and x.shape[-1] == K, (
            f"expected x of shape (..., {G}, {K}), got {x.shape}")
        base_shape = list(x.shape[:-2])
    if bias is not None:
        assert bias.shape == (G, O), bias.shape

    B = math.prod(base_shape) if base_shape else 1
    # Pure reshape (no transpose / extra HBM pass); group columns are selected
    # by the BlockSpec index maps inside the kernel.
    x2d = x.reshape(B, G * K)

    cdt = jnp.dtype(compute_dtype) if compute_dtype is not None else jnp.dtype(x.dtype)
    w_c = weight if weight.dtype == cdt else weight.astype(cdt)   # small, reusable
    bias_f32 = None if bias is None else bias.astype(jnp.float32)

    budget, vmem_limit = _vmem_budgets()

    if group_tile is None:
        GT = _pick_group_tile(G, K, O, cdt.itemsize, budget)
    else:
        GT = int(group_tile)
        assert G % GT == 0, (G, GT)
        assert GT == G or ((GT * K) % 128 == 0 and (GT * O) % 128 == 0), (
            "partial group tiles require group_tile*K and group_tile*O to be "
            "multiples of 128")

    # VMEM accounting (conservative: every pipelined buffer counted twice).
    bx = jnp.dtype(x.dtype).itemsize
    bo = jnp.dtype(out_dtype).itemsize
    cast_extra = 0 if cdt == jnp.dtype(x.dtype) else cdt.itemsize
    fixed = (2 * GT * K * O * cdt.itemsize
             + (2 * G * O * 4 if bias is not None else 0))
    per_row = (2 * GT * K * bx          # x tile (double buffered)
               + 2 * GT * O * bo        # out tile (double buffered)
               + GT * K * cast_extra    # in-kernel compute-dtype copy of x
               + 2 * GT * O * 4)        # f32 accumulator + assembled slab
    row_mult = max(_sublane_multiple(x.dtype), _sublane_multiple(out_dtype))
    tb = _pick_batch_tile(B, per_row, fixed, budget, block_b_max, row_mult)

    out2d = _grouped_linear_2d(x2d, w_c, bias_f32, out_dtype, GT, tb, vmem_limit)

    # TODO(synk): when G*O < 128, fold 128 // (G*O) batch rows into the lane
    # dimension (replicated group weights) for fully unmasked vector stores.
    if reshape:
        return out2d.reshape(*base_shape, G * O)
    return out2d.reshape(*base_shape, G, O)


# ---------------------------------------------------------------------------
# Demo / self-test
# ---------------------------------------------------------------------------

if __name__ == "__main__":
    key = jax.random.PRNGKey(0)
    k1, k2, k3, k4, k5 = jax.random.split(key, 5)

    # ---- Demo 1: module-like config (n_groups=4, input=32, output=16) ------
    G1, K1, O1 = 4, 32, 16
    batch, seq = 2, 8
    bound = 1.0 / (K1 ** 0.5)
    w1 = jax.random.uniform(k1, (G1, K1, O1), minval=-bound, maxval=bound,
                            dtype=jnp.float32)
    # torch init uses zero bias; use nonzero here to exercise the epilogue.
    b1 = 0.1 * jax.random.normal(k2, (G1, O1), dtype=jnp.float32)
    x1 = jax.random.normal(k3, (batch, seq, G1 * K1), dtype=jnp.float32)

    out1 = jax.block_until_ready(grouped_linear(x1, w1, b1, reshape=True))
    x1g = x1.reshape(batch, seq, G1, K1)
    ref1 = (jnp.einsum("...ni,nio->...no", x1g, w1) + b1).reshape(
        batch, seq, G1 * O1)
    assert out1.shape == (batch, seq, G1 * O1), out1.shape
    assert jnp.allclose(out1, ref1, atol=1e-4, rtol=1e-4), \
        float(jnp.max(jnp.abs(out1 - ref1)))

    # reshape=False path + bias=None (bias-free kernel variant, no zero DMA)
    out1b = jax.block_until_ready(grouped_linear(x1g, w1, None, reshape=False))
    ref1b = jnp.einsum("...ni,nio->...no", x1g, w1)
    assert out1b.shape == (batch, seq, G1, O1), out1b.shape
    assert jnp.allclose(out1b, ref1b, atol=1e-4, rtol=1e-4), \
        float(jnp.max(jnp.abs(out1b - ref1b)))

    # ---- Demo 2: lane-aligned config, forced group tiling (GT < G) ---------
    # Exercises the GT<G path: per-group weight resident across batch tiles,
    # dynamic bias row indexing, lane-dense 128-wide blocks.
    G2, K2, O2 = 2, 128, 128
    w2 = jax.random.uniform(k4, (G2, K2, O2), minval=-bound, maxval=bound,
                            dtype=jnp.float32)
    b2 = 0.1 * jax.random.normal(k5, (G2, O2), dtype=jnp.float32)
    x2 = jax.random.normal(k3, (batch, seq, G2 * K2), dtype=jnp.float32)

    out2 = jax.block_until_ready(grouped_linear(x2, w2, b2, group_tile=1))
    x2g = x2.reshape(batch, seq, G2, K2)
    ref2 = (jnp.einsum("...ni,nio->...no", x2g, w2) + b2).reshape(
        batch, seq, G2 * O2)
    assert out2.shape == (batch, seq, G2 * O2), out2.shape
    assert jnp.allclose(out2, ref2, atol=1e-4, rtol=1e-4), \
        float(jnp.max(jnp.abs(out2 - ref2)))

    # ---- Demo 3: bf16 compute dtype (in-kernel x cast, f32 accumulation) ---
    out3 = jax.block_until_ready(
        grouped_linear(x1, w1, b1, compute_dtype=jnp.bfloat16))
    assert out3.shape == ref1.shape and out3.dtype == x1.dtype
    assert jnp.allclose(out3, ref1, atol=5e-2, rtol=5e-2), \
        float(jnp.max(jnp.abs(out3 - ref1)))

    print("KERNEL_OK")
</pallas_src>

<mosaic_0001>
module attributes {stable_mosaic.version = 11 : i64} {
  func.func @kernel(%arg0: i32, %arg1: i32, %arg2: memref<16x128xf32, #tpu.memory_space<vmem>>, %arg3: memref<4x32x16xf32, #tpu.memory_space<vmem>>, %arg4: memref<4x16xf32, #tpu.memory_space<vmem>>, %arg5: memref<16x64xf32, #tpu.memory_space<vmem>>) attributes {dimension_semantics = [#tpu.dimension_semantics<parallel>, #tpu.dimension_semantics<parallel>], iteration_bounds = array<i64: 1, 1>, scalar_prefetch = 0 : i64, scratch_operands = 0 : i64, tpu.core_type = #tpu.core_type<tc>, window_params = [{transform_indices = @transform_0, window_bounds = array<i64: 16, 128>}, {transform_indices = @transform_1, window_bounds = array<i64: 4, 32, 16>}, {pipeline_mode = #tpu.pipeline_mode<synchronous>, transform_indices = @transform_2, window_bounds = array<i64: 4, 16>}, {transform_indices = @transform_3, window_bounds = array<i64: 16, 64>}]} {
    %c0 = arith.constant 0 : index
    %c0_0 = arith.constant 0 : index
    %0 = vector.load %arg2[%c0, %c0_0] : memref<16x128xf32, #tpu.memory_space<vmem>>, vector<16x128xf32>
    %1 = vector.extract_strided_slice %0 {offsets = [0, 0], sizes = [16, 32], strides = [1, 1]} : vector<16x128xf32> to vector<16x32xf32>
    %c0_1 = arith.constant 0 : index
    %c0_2 = arith.constant 0 : index
    %c0_3 = arith.constant 0 : index
    %2 = vector.load %arg3[%c0_1, %c0_2, %c0_3] : memref<4x32x16xf32, #tpu.memory_space<vmem>>, vector<1x32x16xf32>
    %3 = vector.shape_cast %2 : vector<1x32x16xf32> to vector<32x16xf32>
    %cst = arith.constant dense<0.000000e+00> : vector<16x16xf32>
    %4 = tpu.matmul %1, %3, %cst {dimension_numbers = #tpu.dot_dimension_numbers<[1], [0], [0], [1], [0, 0, 1, 1], [], []>} : vector<16x32xf32>, vector<32x16xf32>, vector<16x16xf32> -> vector<16x16xf32>
    %c0_4 = arith.constant 0 : index
    %c0_5 = arith.constant 0 : index
    %5 = vector.load %arg4[%c0_4, %c0_5] : memref<4x16xf32, #tpu.memory_space<vmem>>, vector<1x16xf32>
    %6 = vector.broadcast %5 : vector<1x16xf32> to vector<16x16xf32>
    %7 = arith.addf %4, %6 : vector<16x16xf32>
    %8 = vector.extract_strided_slice %0 {offsets = [0, 32], sizes = [16, 32], strides = [1, 1]} : vector<16x128xf32> to vector<16x32xf32>
    %c1 = arith.constant 1 : index
    %c0_6 = arith.constant 0 : index
    %c0_7 = arith.constant 0 : index
    %9 = vector.load %arg3[%c1, %c0_6, %c0_7] : memref<4x32x16xf32, #tpu.memory_space<vmem>>, vector<1x32x16xf32>
    %10 = vector.shape_cast %9 : vector<1x32x16xf32> to vector<32x16xf32>
    %cst_8 = arith.constant dense<0.000000e+00> : vector<16x16xf32>
    %11 = tpu.matmul %8, %10, %cst_8 {dimension_numbers = #tpu.dot_dimension_numbers<[1], [0], [0], [1], [0, 0, 1, 1], [], []>} : vector<16x32xf32>, vector<32x16xf32>, vector<16x16xf32> -> vector<16x16xf32>
    %c1_9 = arith.constant 1 : index
    %c0_10 = arith.constant 0 : index
    %12 = vector.load %arg4[%c1_9, %c0_10] : memref<4x16xf32, #tpu.memory_space<vmem>>, vector<1x16xf32>
    %13 = vector.broadcast %12 : vector<1x16xf32> to vector<16x16xf32>
    %14 = arith.addf %11, %13 : vector<16x16xf32>
    %15 = vector.extract_strided_slice %0 {offsets = [0, 64], sizes = [16, 32], strides = [1, 1]} : vector<16x128xf32> to vector<16x32xf32>
    %c2 = arith.constant 2 : index
    %c0_11 = arith.constant 0 : index
    %c0_12 = arith.constant 0 : index
    %16 = vector.load %arg3[%c2, %c0_11, %c0_12] : memref<4x32x16xf32, #tpu.memory_space<vmem>>, vector<1x32x16xf32>
    %17 = vector.shape_cast %16 : vector<1x32x16xf32> to vector<32x16xf32>
    %cst_13 = arith.constant dense<0.000000e+00> : vector<16x16xf32>
    %18 = tpu.matmul %15, %17, %cst_13 {dimension_numbers = #tpu.dot_dimension_numbers<[1], [0], [0], [1], [0, 0, 1, 1], [], []>} : vector<16x32xf32>, vector<32x16xf32>, vector<16x16xf32> -> vector<16x16xf32>
    %c2_14 = arith.constant 2 : index
    %c0_15 = arith.constant 0 : index
    %19 = vector.load %arg4[%c2_14, %c0_15] : memref<4x16xf32, #tpu.memory_space<vmem>>, vector<1x16xf32>
    %20 = vector.broadcast %19 : vector<1x16xf32> to vector<16x16xf32>
    %21 = arith.addf %18, %20 : vector<16x16xf32>
    %22 = vector.extract_strided_slice %0 {offsets = [0, 96], sizes = [16, 32], strides = [1, 1]} : vector<16x128xf32> to vector<16x32xf32>
    %c3 = arith.constant 3 : index
    %c0_16 = arith.constant 0 : index
    %c0_17 = arith.constant 0 : index
    %23 = vector.load %arg3[%c3, %c0_16, %c0_17] : memref<4x32x16xf32, #tpu.memory_space<vmem>>, vector<1x32x16xf32>
    %24 = vector.shape_cast %23 : vector<1x32x16xf32> to vector<32x16xf32>
    %cst_18 = arith.constant dense<0.000000e+00> : vector<16x16xf32>
    %25 = tpu.matmul %22, %24, %cst_18 {dimension_numbers = #tpu.dot_dimension_numbers<[1], [0], [0], [1], [0, 0, 1, 1], [], []>} : vector<16x32xf32>, vector<32x16xf32>, vector<16x16xf32> -> vector<16x16xf32>
    %c3_19 = arith.constant 3 : index
    %c0_20 = arith.constant 0 : index
    %26 = vector.load %arg4[%c3_19, %c0_20] : memref<4x16xf32, #tpu.memory_space<vmem>>, vector<1x16xf32>
    %27 = vector.broadcast %26 : vector<1x16xf32> to vector<16x16xf32>
    %28 = arith.addf %25, %27 : vector<16x16xf32>
    %29 = tpu.concatenate %7, %14, %21, %28 in 1 : vector<16x16xf32>, vector<16x16xf32>, vector<16x16xf32>, vector<16x16xf32> -> vector<16x64xf32>
    %c0_21 = arith.constant 0 : index
    %c0_22 = arith.constant 0 : index
    %30 = vector.load %arg5[%c0_21, %c0_22] : memref<16x64xf32, #tpu.memory_space<vmem>>, vector<16x64xf32>
    tpu.vector_store %arg5[%c0_21, %c0_22], %29 {strides = array<i32>} : memref<16x64xf32, #tpu.memory_space<vmem>>, vector<16x64xf32>,
    return
  }
  func.func @transform_0(%arg0: i32, %arg1: i32) -> (i32, i32) {
    %c0_i32 = arith.constant 0 : i32
    return %arg1, %arg0 : i32, i32
  }
  func.func @transform_1(%arg0: i32, %arg1: i32) -> (i32, i32, i32) {
    %c0_i32 = arith.constant 0 : i32
    %c0_i32_0 = arith.constant 0 : i32
    %c0_i32_1 = arith.constant 0 : i32
    return %arg0, %c0_i32, %c0_i32_0 : i32, i32, i32
  }
  func.func @transform_2(%arg0: i32, %arg1: i32) -> (i32, i32) {
    %c0_i32 = arith.constant 0 : i32
    %c0_i32_0 = arith.constant 0 : i32
    %c0_i32_1 = arith.constant 0 : i32
    return %c0_i32, %c0_i32_0 : i32, i32
  }
  func.func @transform_3(%arg0: i32, %arg1: i32) -> (i32, i32) {
    %c0_i32 = arith.constant 0 : i32
    return %arg1, %arg0 : i32, i32
  }
}

</mosaic_0001>

<llo_original>
// kernel: tpu_custom_call.1
$region0: #{tpu_custom_call.1}
  #allocation0 [shape = 'u32[]', space=smem, size = 0x4, offset = 0x4, fixed_abs, tag = 'smem constant byte address 0x4 - core index']
  #allocation1 [shape = 'u32[72,128]{1,0:T(1,128)}', space=vmem, size = 0x9000, scoped, tag = 'internal scratch']
  %s0 = inlined_call_operand.vmem [shape: f32[16,128], index: 0, kind: input, shape index: {}]
  %s1 = inlined_call_operand.vmem [shape: f32[4,32,16], index: 1, kind: input, shape index: {}]
  %s2 = inlined_call_operand.vmem [shape: f32[4,16], index: 2, kind: input, shape index: {}]
  %s3 = inlined_call_operand.hbm [shape: f32[16,64], index: 3, kind: output, shape index: {}]
  %s4 = sld [smem:[#allocation0]]
  $region22: #{tpu_custom_call.1} parent=0
    _
  %s6 = ssub.s32 1, %s4
  %s7 = scalar_select 0, %s6, %s4
  $region1: #{tpu_custom_call.1} parent=0
    #allocation2 [shape = 'u8[8192]{0}', space=vmem, size = 0x2000, scoped, tag = 'output window, operand 0, single buffered']
    #allocation3 [shape = 's32[1]{0}', space=sflag, size = 0x4, scoped, tag = 'scoped memory for tpu_custom_call.1']
    %8 = vsyncpa [#allocation3], 0
    // Predicated region
    $region2: #{tpu_custom_call.1} parent=1 // pred_check
      _
    $region3: #{tpu_custom_call.1} parent=1 // pred_check_branch
      %10 = sbr.rel (0) target = $region5
    $region4: #{tpu_custom_call.1} parent=1 // pred_region
      _
    $region5: #{tpu_custom_call.1} parent=1 // pred_fallthru
      _
    // Predicated region
    $region6: #{tpu_custom_call.1} parent=1 // pred_check
      _
    $region7: #{tpu_custom_call.1} parent=1 // pred_check_branch
      %12 = sbr.rel (0) target = $region9
    $region8: #{tpu_custom_call.1} parent=1 // pred_region
      _
    $region9: #{tpu_custom_call.1} parent=1 // pred_fallthru
      _
    // Predicated region
    $region10: #{tpu_custom_call.1} parent=1 // pred_check
      _
    $region11: #{tpu_custom_call.1} parent=1 // pred_check_branch
      %14 = sbr.rel (0) target = $region13
    $region12: #{tpu_custom_call.1} parent=1 // pred_region
      _
    $region13: #{tpu_custom_call.1} parent=1 // pred_fallthru
      _
    %v15 = vld [vmem:[%s0] sm:$0xff]
    %v16 = vld [vmem:[%s0 + $0x8] sm:$0xff]
    %v17 = vld [vmem:[%s1] sm:$0xff]
    %v18 = vld [vmem:[%s1 + $0x8] sm:$0xff]
    %v19 = vld [vmem:[%s1 + $0x10] sm:$0xff]
    %v20 = vld [vmem:[%s1 + $0x18] sm:$0xff]
    %v21 = vld [vmem:[%s2] sm:$0x1]
    %v22 = vperm.slane %v21, 0
    %vm23 = vcmask 261120
    %v25 = vsel %vm23, %v15, 0
    %v28 = vsel %vm23, %v16, 0
    %30 = vmatpush.msra.mxu0 0.0
    %31 = vmatpush.msra.mxu0 0.0
    %32 = vmatpush.msra.mxu0 0.0
    %33 = vmatpush.msra.mxu0 0.0
    %34 = vmatpush.msra.mxu0 0.0
    %35 = vmatpush.msra.mxu0 0.0
    %36 = vmatpush.msra.mxu0 0.0
    %37 = vmatpush.msra.mxu0 0.0
    %38 = vmatpush.msra.mxu0 0.0
    %39 = vmatpush.msra.mxu0 0.0
    %40 = vmatpush.msra.mxu0 0.0
    %41 = vmatpush.msra.mxu0 0.0
    %42 = vmatpush.msra.mxu0 %v20
    %43 = vmatpush.msra.mxu0 %v19
    %44 = vmatpush.msra.mxu0 %v18
    %45 = vmatpush.msra.mxu0 %v17
    %46 = vmatmul.f32.gmra.mxu0 %v25
    %v47 = vpop.f32.mrf.mxu0
    %v48 = vadd.f32 %v22, %v47
    %49 = vmatmul.f32.gmra.mxu0 %v28
    %v50 = vpop.f32.mrf.mxu0
    %v51 = vadd.f32 %v22, %v50
    %52 = vdwg.mxu0
    %s53 = scalar_lea.vmem %s1, 32
    %v54 = vld [vmem:[%s53] sm:$0xff]
    %v55 = vld [vmem:[%s53 + $0x8] sm:$0xff]
    %v56 = vld [vmem:[%s53 + $0x10] sm:$0xff]
    %v57 = vld [vmem:[%s53 + $0x18] sm:$0xff]
    %v58 = vld [vmem:[%s2 + $0x1] sm:$0x1]
    %v59 = vperm.slane %v58, 0
    %60 = vrot.lane.b32.xlu0 %v15, 96
    %v61 = vpop.permute.xlu0 %60
    %62 = vrot.lane.b32.xlu0 %v16, 96
    %v63 = vpop.permute.xlu0 %62
    %v64 = vsel %vm23, %v61, 0
    %v66 = vsel %vm23, %v63, 0
    %68 = vmatpush.msra.mxu0 0.0
    %69 = vmatpush.msra.mxu0 0.0
    %70 = vmatpush.msra.mxu0 0.0
    %71 = vmatpush.msra.mxu0 0.0
    %72 = vmatpush.msra.mxu0 0.0
    %73 = vmatpush.msra.mxu0 0.0
    %74 = vmatpush.msra.mxu0 0.0
    %75 = vmatpush.msra.mxu0 0.0
    %76 = vmatpush.msra.mxu0 0.0
    %77 = vmatpush.msra.mxu0 0.0
    %78 = vmatpush.msra.mxu0 0.0
    %79 = vmatpush.msra.mxu0 0.0
    %80 = vmatpush.msra.mxu0 %v57
    %81 = vmatpush.msra.mxu0 %v56
    %82 = vmatpush.msra.mxu0 %v55
    %83 = vmatpush.msra.mxu0 %v54
    %84 = vmatmul.f32.gmra.mxu0 %v64
    %v85 = vpop.f32.mrf.mxu0
    %v86 = vadd.f32 %v59, %v85
    %87 = vmatmul.f32.gmra.mxu0 %v66
    %v88 = vpop.f32.mrf.mxu0
    %v89 = vadd.f32 %v59, %v88
    %90 = vdwg.mxu0
    %s91 = scalar_lea.vmem %s1, 64
    %v92 = vld [vmem:[%s91] sm:$0xff]
    %v93 = vld [vmem:[%s91 + $0x8] sm:$0xff]
    %v94 = vld [vmem:[%s91 + $0x10] sm:$0xff]
    %v95 = vld [vmem:[%s91 + $0x18] sm:$0xff]
    %v96 = vld [vmem:[%s2 + $0x2] sm:$0x1]
    %v97 = vperm.slane %v96, 0
    %98 = vrot.lane.b32.xlu0 %v15, 64
    %v99 = vpop.permute.xlu0 %98
    %100 = vrot.lane.b32.xlu0 %v16, 64
    %v101 = vpop.permute.xlu0 %100
    %v102 = vsel %vm23, %v99, 0
    %v104 = vsel %vm23, %v101, 0
    %106 = vmatpush.msra.mxu0 0.0
    %107 = vmatpush.msra.mxu0 0.0
    %108 = vmatpush.msra.mxu0 0.0
    %109 = vmatpush.msra.mxu0 0.0
    %110 = vmatpush.msra.mxu0 0.0
    %111 = vmatpush.msra.mxu0 0.0
    %112 = vmatpush.msra.mxu0 0.0
    %113 = vmatpush.msra.mxu0 0.0
    %114 = vmatpush.msra.mxu0 0.0
    %115 = vmatpush.msra.mxu0 0.0
    %116 = vmatpush.msra.mxu0 0.0
    %117 = vmatpush.msra.mxu0 0.0
    %118 = vmatpush.msra.mxu0 %v95
    %119 = vmatpush.msra.mxu0 %v94
    %120 = vmatpush.msra.mxu0 %v93
    %121 = vmatpush.msra.mxu0 %v92
    %122 = vmatmul.f32.gmra.mxu0 %v102
    %v123 = vpop.f32.mrf.mxu0
    %v124 = vadd.f32 %v97, %v123
    %125 = vmatmul.f32.gmra.mxu0 %v104
    %v126 = vpop.f32.mrf.mxu0
    %v127 = vadd.f32 %v97, %v126
    %128 = vdwg.mxu0
    %s129 = scalar_lea.vmem %s1, 96
    %v130 = vld [vmem:[%s129] sm:$0xff]
    %v131 = vld [vmem:[%s129 + $0x8] sm:$0xff]
    %v132 = vld [vmem:[%s129 + $0x10] sm:$0xff]
    %v133 = vld [vmem:[%s129 + $0x18] sm:$0xff]
    %v134 = vld [vmem:[%s2 + $0x3] sm:$0x1]
    %v135 = vperm.slane %v134, 0
    %136 = vrot.lane.b32.xlu0 %v15, 32
    %v137 = vpop.permute.xlu0 %136
    %138 = vrot.lane.b32.xlu0 %v16, 32
    %v139 = vpop.permute.xlu0 %138
    %v140 = vsel %vm23, %v137, 0
    %v142 = vsel %vm23, %v139, 0
    %144 = vmatpush.msra.mxu0 0.0
    %145 = vmatpush.msra.mxu0 0.0
    %146 = vmatpush.msra.mxu0 0.0
    %147 = vmatpush.msra.mxu0 0.0
    %148 = vmatpush.msra.mxu0 0.0
    %149 = vmatpush.msra.mxu0 0.0
    %150 = vmatpush.msra.mxu0 0.0
    %151 = vmatpush.msra.mxu0 0.0
    %152 = vmatpush.msra.mxu0 0.0
    %153 = vmatpush.msra.mxu0 0.0
    %154 = vmatpush.msra.mxu0 0.0
    %155 = vmatpush.msra.mxu0 0.0
    %156 = vmatpush.msra.mxu0 %v133
    %157 = vmatpush.msra.mxu0 %v132
    %158 = vmatpush.msra.mxu0 %v131
    %159 = vmatpush.msra.mxu0 %v130
    %160 = vmatmul.f32.gmra.mxu0 %v140
    %v161 = vpop.f32.mrf.mxu0
    %v162 = vadd.f32 %v135, %v161
    %163 = vmatmul.f32.gmra.mxu0 %v142
    %v164 = vpop.f32.mrf.mxu0
    %v165 = vadd.f32 %v135, %v164
    %166 = vdwg.mxu0
    %169 = vrot.lane.b32.xlu0 %v86, 16
    %v170 = vpop.permute.xlu0 %169
    %171 = vrot.lane.b32.xlu0 %v89, 16
    %v172 = vpop.permute.xlu0 %171
    %177 = vrot.lane.b32.xlu0 %v124, 32
    %v178 = vpop.permute.xlu0 %177
    %179 = vrot.lane.b32.xlu0 %v127, 32
    %v180 = vpop.permute.xlu0 %179
    %185 = vrot.lane.b32.xlu0 %v162, 48
    %v186 = vpop.permute.xlu0 %185
    %187 = vrot.lane.b32.xlu0 %v165, 48
    %v188 = vpop.permute.xlu0 %187
    %vm191 = vcmask 130048
    %v192 = vsel %vm191, %v48, %v170
    %v193 = vsel %vm191, %v51, %v172
    %v194 = vsel %vm23, %v192, %v178
    %v195 = vsel %vm23, %v193, %v180
    %vm196 = vcmask 392192
    %v197 = vsel %vm196, %v194, %v186
    %v198 = vsel %vm196, %v195, %v188
    %vm199 = vcmask 523264
    %200 = vst.msk [vmem:[#allocation2] sm:$0xff] %vm199, %v197
    %201 = vst.msk [vmem:[#allocation2 + $0x8] sm:$0xff] %vm199, %v198
    // Predicated region
    $region14: #{tpu_custom_call.1} parent=1 // pred_check
      _
    $region15: #{tpu_custom_call.1} parent=1 // pred_check_branch
      %203 = sbr.rel (0) target = $region17
    $region16: #{tpu_custom_call.1} parent=1 // pred_region
      %205 = vsyncadd [#allocation3], 0
      %s206 = sshll.u32 [#allocation2], 4
      %s207 = int_to_ptr.vmem [resolvable:$true] %s206
      %s208 = sshll.u32 %s3, 4
      %s209 = int_to_ptr.hbm [resolvable:$true] %s208
      %214 = dma.vmem_to_hbm [thread:$0]  %s207, 256, %s209, [#allocation3], 128, 128, 8
    $region17: #{tpu_custom_call.1} parent=1 // pred_fallthru
      _
    // Predicated region
    $region18: #{tpu_custom_call.1} parent=1 // pred_check
      _
    $region19: #{tpu_custom_call.1} parent=1 // pred_check_branch
      %216 = sbr.rel (0) target = $region21
    $region20: #{tpu_custom_call.1} parent=1 // pred_region
      %218 = dma.done [#allocation3], 256
    $region21: #{tpu_custom_call.1} parent=1 // pred_fallthru
      _
    %219 = vsyncpa [#allocation3], 1

</llo_original>
